<compile_context>
chip_gen: v7x
topology: tpu7x:2x2x1
jax: 0.10.0
libtpu: 0.0.40
codegen_flags: <defaults>
</compile_context>

<pallas_src>
import math
import functools

import jax
import jax.numpy as jnp
from jax import lax
from jax.experimental import pallas as pl
from jax.experimental.pallas import tpu as pltpu


def _round_up(x, mult):
    return ((x + mult - 1) // mult) * mult


def _arc_margin_kernel(hit_ref, x_ref, w_ref, inv_w_ref, sxinv_ref, label_ref,
                       out_ref, *, s, inv_s, cos_m, sin_m, th, mm, easy_margin,
                       block_c):
    i = pl.program_id(0)                               # B-tile index
    j = pl.program_id(1)                               # C-tile index

    # Raw (un-normalized, input-dtype) contraction over the last dim of BOTH
    # operands (no W transpose copy), f32 accumulation on the MXU.
    t = lax.dot_general(
        x_ref[...], w_ref[...],
        dimension_numbers=(((1,), (1,)), ((), ())),
        preferred_element_type=jnp.float32)            # [tB, tC] = ||x||*||w||*cos
    t = t * inv_w_ref[...]                             # column scale -> ||x|| * cos
    sxinv = sxinv_ref[...]                             # [tB, 1] = s / ||x||
    scaled = t * sxinv                                 # = s * cos_theta

    # Does any row of this B tile have its label inside this C tile? (SMEM)
    hit = hit_ref[i, j] > 0

    @pl.when(hit)
    def _():
        labels = label_ref[...]                        # [tB, 1] int32
        col_ids = lax.broadcasted_iota(jnp.int32, t.shape, 1) + j * block_c
        one_hot = col_ids == labels                    # [tB, tC]
        # Per-row label cosine via a masked lane reduce, then O(tB) margin math.
        cos_l = (jnp.sum(jnp.where(one_hot, t, 0.0), axis=-1, keepdims=True)
                 * sxinv) * inv_s                      # [tB, 1] true cos(theta)
        sin_l = jnp.sqrt(jnp.maximum(1.0 - cos_l * cos_l, 0.0))
        ctm = cos_l * cos_m - sin_l * sin_m
        if easy_margin:
            ctm = jnp.where(cos_l > 0.0, ctm, cos_l)
        else:
            ctm = jnp.where(cos_l > th, ctm, cos_l - mm)
        out_ref[...] = jnp.where(one_hot, ctm * s, scaled).astype(out_ref.dtype)

    @pl.when(jnp.logical_not(hit))
    def _():
        out_ref[...] = scaled.astype(out_ref.dtype)


def arc_margin_product(x, weight, label, *, s=30.0, m=0.1, easy_margin=True,
                       block_b=256, block_c=512):
    """x: [B, D], weight: [C, D], label: [B] int. Returns [B, C] f32 logits."""
    B, D = x.shape
    C, D2 = weight.shape
    assert D == D2

    # tB multiple of 8 (sublanes), tC multiple of 128 (lane-dense unmasked
    # stores). D kept whole (full contraction in VMEM).
    tB = min(block_b, _round_up(B, 8))
    tC = min(block_c, _round_up(C, 128))
    Bp = _round_up(B, tB)
    Cp = _round_up(C, tC)
    nB, nC = Bp // tB, Cp // tC

    label = label.astype(jnp.int32)
    if Bp != B:
        x = jnp.pad(x, ((0, Bp - B), (0, 0)))
        label = jnp.pad(label, (0, Bp - B), constant_values=-1)
    if Cp != C:
        weight = jnp.pad(weight, ((0, Cp - C), (0, 0)))

    # Hoisted F.normalize scales (eps=1e-12 -> max(sumsq, 1e-24) clamp keeps
    # padded all-zero rows/cols finite: 0 * finite = 0, never inf*0 NaN).
    xf = x.astype(jnp.float32)
    wf = weight.astype(jnp.float32)
    inv_x = lax.rsqrt(jnp.maximum(jnp.sum(xf * xf, axis=-1, keepdims=True),
                                  1e-24))                         # [Bp, 1]
    inv_w = lax.rsqrt(jnp.maximum(jnp.sum(wf * wf, axis=-1),
                                  1e-24)).reshape(1, Cp)          # [1, Cp]
    sxinv = (inv_x * float(s)).astype(jnp.float32)                # s / ||x||

    # [nB, nC] hit-map for the per-tile margin gate (goes to SMEM via scalar
    # prefetch). Padded rows (label = -1) contribute no hits.
    rows = jnp.arange(Bp, dtype=jnp.int32) // tB
    cols = jnp.clip(label, 0, Cp - 1) // tC
    hitmap = jnp.zeros((nB, nC), jnp.int32).at[rows, cols].add(
        (label >= 0).astype(jnp.int32))

    label2d = label.reshape(Bp, 1)

    kernel = functools.partial(
        _arc_margin_kernel,
        s=float(s), inv_s=1.0 / float(s),
        cos_m=math.cos(m), sin_m=math.sin(m),
        th=math.cos(math.pi - m), mm=math.sin(math.pi - m) * m,
        easy_margin=easy_margin, block_c=tC)

    # VMEM budget: double-buffered x / W / scale tiles + output tile.
    # NOTE: on v7x (64 MiB physical VMEM) keep block_b/block_c small enough
    # that this stays well under ~32 MiB; v5e/v6e (128 MiB) can go larger.
    est = (2 * (tB * D * x.dtype.itemsize + tC * D * weight.dtype.itemsize
                + tC * 4 + 2 * tB * 4)
           + 2 * tB * tC * 4)
    vmem_limit = int(min(max(2 * est, 32 * 1024 * 1024), 100 * 1024 * 1024))

    out = pl.pallas_call(
        kernel,
        out_shape=jax.ShapeDtypeStruct((Bp, Cp), jnp.float32),
        grid_spec=pltpu.PrefetchScalarGridSpec(
            num_scalar_prefetch=1,
            grid=(nB, nC),
            in_specs=[
                pl.BlockSpec((tB, D), lambda i, j, hm: (i, 0)),   # x tile
                pl.BlockSpec((tC, D), lambda i, j, hm: (j, 0)),   # W tile (streamed)
                pl.BlockSpec((1, tC), lambda i, j, hm: (0, j)),   # 1/||w|| col scale
                pl.BlockSpec((tB, 1), lambda i, j, hm: (i, 0)),   # s/||x|| row scale
                pl.BlockSpec((tB, 1), lambda i, j, hm: (i, 0)),   # labels (hit branch)
            ],
            out_specs=pl.BlockSpec((tB, tC), lambda i, j, hm: (i, j)),
        ),
        compiler_params=pltpu.CompilerParams(
            dimension_semantics=("parallel", "parallel"),
            vmem_limit_bytes=vmem_limit),
    )(hitmap, x, weight, inv_w, sxinv, label2d)

    if Bp != B or Cp != C:
        out = out[:B, :C]
    return out


def _reference(x, weight, label, *, s=30.0, m=0.1, easy_margin=True):
    # Pure-JAX reference mirroring the PyTorch forward.
    def norm(a):
        return a / jnp.maximum(jnp.linalg.norm(a, axis=-1, keepdims=True), 1e-12)
    cos = norm(x.astype(jnp.float32)) @ norm(weight.astype(jnp.float32)).T
    sin = jnp.sqrt(jnp.clip(1.0 - cos ** 2, 0.0, 1.0))
    cos_m, sin_m = math.cos(m), math.sin(m)
    th, mm = math.cos(math.pi - m), math.sin(math.pi - m) * m
    ctm = cos * cos_m - sin * sin_m
    ctm = jnp.where(cos > 0, ctm, cos) if easy_margin else jnp.where(cos > th, ctm, cos - mm)
    one_hot = jax.nn.one_hot(label, weight.shape[0], dtype=cos.dtype)
    return (one_hot * ctm + (1.0 - one_hot) * cos) * s


if __name__ == "__main__":
    key = jax.random.PRNGKey(0)
    k1, k2, k3, k4, k5, k6 = jax.random.split(key, 6)

    # --- Test 1: multi-tile grid (hit + miss C tiles, column offsets). ---
    B, D, C = 16, 64, 384
    x = jax.random.normal(k1, (B, D), dtype=jnp.float32)
    bound = math.sqrt(6.0 / (D + C))                  # nn.init.xavier_uniform_
    w = jax.random.uniform(k2, (C, D), dtype=jnp.float32,
                           minval=-bound, maxval=bound)
    label = jax.random.randint(k3, (B,), 0, C, dtype=jnp.int32)

    out = jax.block_until_ready(
        arc_margin_product(x, w, label, s=30.0, m=0.1, easy_margin=True,
                           block_b=8, block_c=128))   # grid = (2, 3)
    ref = _reference(x, w, label, s=30.0, m=0.1, easy_margin=True)
    assert out.shape == (B, C)
    assert jnp.allclose(out, ref, atol=5e-4, rtol=5e-4), \
        f"test1 max abs err {jnp.max(jnp.abs(out - ref))}"

    # --- Test 2: ragged B / C (padding path) + easy_margin=False branch. ---
    B2, D2, C2 = 5, 48, 200
    x2 = jax.random.normal(k4, (B2, D2), dtype=jnp.float32)
    bound2 = math.sqrt(6.0 / (D2 + C2))
    w2 = jax.random.uniform(k5, (C2, D2), dtype=jnp.float32,
                            minval=-bound2, maxval=bound2)
    label2 = jax.random.randint(k6, (B2,), 0, C2, dtype=jnp.int32)

    out2 = jax.block_until_ready(
        arc_margin_product(x2, w2, label2, s=30.0, m=0.1, easy_margin=False))
    ref2 = _reference(x2, w2, label2, s=30.0, m=0.1, easy_margin=False)
    assert out2.shape == (B2, C2)
    assert jnp.allclose(out2, ref2, atol=5e-4, rtol=5e-4), \
        f"test2 max abs err {jnp.max(jnp.abs(out2 - ref2))}"

    # --- Test 3: bf16 operands stay bf16 on the MXU (f32 accumulation). ---
    xb = x.astype(jnp.bfloat16)
    wb = w.astype(jnp.bfloat16)
    out3 = jax.block_until_ready(
        arc_margin_product(xb, wb, label, s=30.0, m=0.1, easy_margin=True,
                           block_b=16, block_c=128))
    ref3 = _reference(xb.astype(jnp.float32), wb.astype(jnp.float32), label,
                      s=30.0, m=0.1, easy_margin=True)
    assert jnp.allclose(out3, ref3, atol=5e-3, rtol=5e-3), \
        f"test3 max abs err {jnp.max(jnp.abs(out3 - ref3))}"

    print("KERNEL_OK")
</pallas_src>

<mosaic_0001>
module attributes {stable_mosaic.version = 11 : i64} {
  func.func @_arc_margin_kernel(%arg0: i32, %arg1: i32, %arg2: memref<2x3xi32, #tpu.memory_space<smem>>, %arg3: memref<8x64xf32, #tpu.memory_space<vmem>>, %arg4: memref<128x64xf32, #tpu.memory_space<vmem>>, %arg5: memref<1x128xf32, #tpu.memory_space<vmem>>, %arg6: memref<8x1xf32, #tpu.memory_space<vmem>>, %arg7: memref<8x1xi32, #tpu.memory_space<vmem>>, %arg8: memref<8x128xf32, #tpu.memory_space<vmem>>) attributes {dimension_semantics = [#tpu.dimension_semantics<parallel>, #tpu.dimension_semantics<parallel>], iteration_bounds = array<i64: 2, 3>, scalar_prefetch = 1 : i64, scratch_operands = 0 : i64, tpu.core_type = #tpu.core_type<tc>, window_params = [{transform_indices = @transform_0, window_bounds = array<i64: 8, 64>}, {transform_indices = @transform_1, window_bounds = array<i64: 128, 64>}, {transform_indices = @transform_2, window_bounds = array<i64: 1, 128>}, {transform_indices = @transform_3, window_bounds = array<i64: 8, 1>}, {transform_indices = @transform_4, window_bounds = array<i64: 8, 1>}, {transform_indices = @transform_5, window_bounds = array<i64: 8, 128>}]} {
    %c0 = arith.constant 0 : index
    %c0_0 = arith.constant 0 : index
    %0 = vector.load %arg3[%c0, %c0_0] : memref<8x64xf32, #tpu.memory_space<vmem>>, vector<8x64xf32>
    %c0_1 = arith.constant 0 : index
    %c0_2 = arith.constant 0 : index
    %1 = vector.load %arg4[%c0_1, %c0_2] : memref<128x64xf32, #tpu.memory_space<vmem>>, vector<128x64xf32>
    %cst = arith.constant dense<0.000000e+00> : vector<8x128xf32>
    %2 = tpu.matmul %0, %1, %cst {dimension_numbers = #tpu.dot_dimension_numbers<[1], [1], [0], [0], [0, 0, 1, 0], [], []>} : vector<8x64xf32>, vector<128x64xf32>, vector<8x128xf32> -> vector<8x128xf32>
    %c0_3 = arith.constant 0 : index
    %c0_4 = arith.constant 0 : index
    %3 = vector.load %arg5[%c0_3, %c0_4] : memref<1x128xf32, #tpu.memory_space<vmem>>, vector<1x128xf32>
    %4 = vector.broadcast %3 : vector<1x128xf32> to vector<8x128xf32>
    %5 = arith.mulf %2, %4 : vector<8x128xf32>
    %c0_5 = arith.constant 0 : index
    %c0_6 = arith.constant 0 : index
    %6 = vector.load %arg6[%c0_5, %c0_6] : memref<8x1xf32, #tpu.memory_space<vmem>>, vector<8x1xf32>
    %7 = vector.broadcast %6 : vector<8x1xf32> to vector<8x128xf32>
    %8 = arith.mulf %5, %7 : vector<8x128xf32>
    %9 = arith.index_cast %arg0 : i32 to index
    %10 = arith.index_cast %arg1 : i32 to index
    %11 = memref.load %arg2[%9, %10] : memref<2x3xi32, #tpu.memory_space<smem>>
    %c0_i32 = arith.constant 0 : i32
    %12 = arith.cmpi sgt, %11, %c0_i32 : i32
    %13 = arith.extui %12 : i1 to i32
    %c0_i32_7 = arith.constant 0 : i32
    %14 = arith.cmpi ne, %13, %c0_i32_7 : i32
    scf.if %14 {
      %c0_9 = arith.constant 0 : index
      %c0_10 = arith.constant 0 : index
      %18 = vector.load %arg7[%c0_9, %c0_10] : memref<8x1xi32, #tpu.memory_space<vmem>>, vector<8x1xi32>
      %19 = tpu.iota {dimensions = array<i32: 1>} : vector<8x128xi32>
      %c128_i32 = arith.constant 128 : i32
      %20 = arith.muli %arg1, %c128_i32 : i32
      %21 = vector.broadcast %20 : i32 to vector<8x128xi32>
      %22 = arith.addi %19, %21 : vector<8x128xi32>
      %23 = vector.broadcast %18 : vector<8x1xi32> to vector<8x128xi32>
      %24 = arith.cmpi eq, %22, %23 : vector<8x128xi32>
      %cst_11 = arith.constant 0.000000e+00 : f32
      %25 = vector.broadcast %cst_11 : f32 to vector<8x128xf32>
      %26 = arith.select %24, %5, %25 : vector<8x128xi1>, vector<8x128xf32>
      %cst_12 = arith.constant dense<0.000000e+00> : vector<8xf32>
      %27 = vector.multi_reduction <add>, %26, %cst_12 [1] : vector<8x128xf32> to vector<8xf32>
      %28 = vector.shape_cast %27 : vector<8xf32> to vector<8x1xf32>
      %29 = arith.mulf %28, %6 : vector<8x1xf32>
      %cst_13 = arith.constant 0.0333333351 : f32
      %30 = vector.broadcast %cst_13 : f32 to vector<8x1xf32>
      %31 = arith.mulf %29, %30 : vector<8x1xf32>
      %32 = arith.mulf %31, %31 : vector<8x1xf32>
      %cst_14 = arith.constant 1.000000e+00 : f32
      %33 = vector.broadcast %cst_14 : f32 to vector<8x1xf32>
      %34 = arith.subf %33, %32 : vector<8x1xf32>
      %cst_15 = arith.constant 0.000000e+00 : f32
      %35 = vector.broadcast %cst_15 : f32 to vector<8x1xf32>
      %36 = arith.maximumf %34, %35 : vector<8x1xf32>
      %37 = math.sqrt %36 : vector<8x1xf32>
      %cst_16 = arith.constant 0.995004177 : f32
      %38 = vector.broadcast %cst_16 : f32 to vector<8x1xf32>
      %39 = arith.mulf %31, %38 : vector<8x1xf32>
      %cst_17 = arith.constant 0.0998334139 : f32
      %40 = vector.broadcast %cst_17 : f32 to vector<8x1xf32>
      %41 = arith.mulf %37, %40 : vector<8x1xf32>
      %42 = arith.subf %39, %41 : vector<8x1xf32>
      %cst_18 = arith.constant 0.000000e+00 : f32
      %43 = vector.broadcast %cst_18 : f32 to vector<8x1xf32>
      %44 = arith.cmpf ogt, %31, %43 : vector<8x1xf32>
      %45 = arith.select %44, %42, %31 : vector<8x1xi1>, vector<8x1xf32>
      %cst_19 = arith.constant 3.000000e+01 : f32
      %46 = vector.broadcast %cst_19 : f32 to vector<8x1xf32>
      %47 = arith.mulf %45, %46 : vector<8x1xf32>
      %48 = vector.shape_cast %47 : vector<8x1xf32> to vector<8x1xf32>
      %49 = vector.broadcast %48 : vector<8x1xf32> to vector<8x128xf32>
      %50 = arith.select %24, %49, %8 : vector<8x128xi1>, vector<8x128xf32>
      %c0_20 = arith.constant 0 : index
      %c0_21 = arith.constant 0 : index
      %51 = vector.load %arg8[%c0_20, %c0_21] : memref<8x128xf32, #tpu.memory_space<vmem>>, vector<8x128xf32>
      tpu.vector_store %arg8[%c0_20, %c0_21], %50 {strides = array<i32>} : memref<8x128xf32, #tpu.memory_space<vmem>>, vector<8x128xf32>,
    } else {
    }
    %true = arith.constant true
    %15 = arith.xori %12, %true : i1
    %16 = arith.extui %15 : i1 to i32
    %c0_i32_8 = arith.constant 0 : i32
    %17 = arith.cmpi ne, %16, %c0_i32_8 : i32
    scf.if %17 {
      %c0_9 = arith.constant 0 : index
      %c0_10 = arith.constant 0 : index
      %18 = vector.load %arg8[%c0_9, %c0_10] : memref<8x128xf32, #tpu.memory_space<vmem>>, vector<8x128xf32>
      tpu.vector_store %arg8[%c0_9, %c0_10], %8 {strides = array<i32>} : memref<8x128xf32, #tpu.memory_space<vmem>>, vector<8x128xf32>,
    } else {
    }
    return
  }
  func.func @transform_0(%arg0: i32, %arg1: i32, %arg2: memref<2x3xi32, #tpu.memory_space<smem>>) -> (i32, i32) {
    %c0_i32 = arith.constant 0 : i32
    %c0_i32_0 = arith.constant 0 : i32
    return %arg0, %c0_i32 : i32, i32
  }
  func.func @transform_1(%arg0: i32, %arg1: i32, %arg2: memref<2x3xi32, #tpu.memory_space<smem>>) -> (i32, i32) {
    %c0_i32 = arith.constant 0 : i32
    %c0_i32_0 = arith.constant 0 : i32
    return %arg1, %c0_i32 : i32, i32
  }
  func.func @transform_2(%arg0: i32, %arg1: i32, %arg2: memref<2x3xi32, #tpu.memory_space<smem>>) -> (i32, i32) {
    %c0_i32 = arith.constant 0 : i32
    %c0_i32_0 = arith.constant 0 : i32
    return %c0_i32, %arg1 : i32, i32
  }
  func.func @transform_3(%arg0: i32, %arg1: i32, %arg2: memref<2x3xi32, #tpu.memory_space<smem>>) -> (i32, i32) {
    %c0_i32 = arith.constant 0 : i32
    %c0_i32_0 = arith.constant 0 : i32
    return %arg0, %c0_i32 : i32, i32
  }
  func.func @transform_4(%arg0: i32, %arg1: i32, %arg2: memref<2x3xi32, #tpu.memory_space<smem>>) -> (i32, i32) {
    %c0_i32 = arith.constant 0 : i32
    %c0_i32_0 = arith.constant 0 : i32
    return %arg0, %c0_i32 : i32, i32
  }
  func.func @transform_5(%arg0: i32, %arg1: i32, %arg2: memref<2x3xi32, #tpu.memory_space<smem>>) -> (i32, i32) {
    %c0_i32 = arith.constant 0 : i32
    return %arg0, %arg1 : i32, i32
  }
}

</mosaic_0001>

<llo_original>
// kernel: tpu_custom_call.1
$region0: #{tpu_custom_call.1}
  #allocation0 [shape = 'u32[]', space=smem, size = 0x4, offset = 0x4, fixed_abs, tag = 'smem constant byte address 0x4 - core index']
  #allocation1 [shape = 'u32[144,128]{1,0:T(1,128)}', space=vmem, size = 0x12000, scoped, tag = 'internal scratch']
  #allocation2 [shape = 's32[1]{0}', space=sflag, size = 0x4, scoped, tag = 'scoped memory for tpu_custom_call.1']
  #allocation3 [shape = 'u8[1024]{0}', space=smem, size = 0x400, scoped, tag = 'prefetched SMEM operand 0']
  %s0 = inlined_call_operand.vmem [shape: s32[2,3], index: 0, kind: input, shape index: {}]
  %s1 = inlined_call_operand.vmem [shape: f32[16,64], index: 1, kind: input, shape index: {}]
  %s2 = inlined_call_operand.vmem [shape: f32[384,64], index: 2, kind: input, shape index: {}]
  %s3 = inlined_call_operand.vmem [shape: f32[1,384], index: 3, kind: input, shape index: {}]
  %s4 = inlined_call_operand.vmem [shape: f32[16,1], index: 4, kind: input, shape index: {}]
  %s5 = inlined_call_operand.vmem [shape: s32[16,1], index: 5, kind: input, shape index: {}]
  %s6 = inlined_call_operand.hbm [shape: f32[16,384], index: 6, kind: output, shape index: {}]
  %s7 = sld [smem:[#allocation0]]
  $region61: #{tpu_custom_call.1} parent=0
    _
  %s9 = ssub.s32 1, %s7
  %s10 = scalar_select 0, %s9, %s7
  %s11 = sshll.u32 %s0, 4
  %s12 = int_to_ptr.vmem [resolvable:$true] %s11
  %14 = dma.vmem_to_smem %s12, 32, [#allocation3], [#allocation2]
  %15 = dma.done [#allocation2], 32
  %16 = sfence
  $region1: #{tpu_custom_call.1} parent=0
    #allocation4 [shape = 'u8[8192]{0}', space=vmem, size = 0x2000, scoped, tag = 'output window, operand 0']
    #allocation5 [shape = 's32[2]{0}', space=sflag, size = 0x8, scoped, tag = 'scoped memory for tpu_custom_call.1']
    %17 = vsyncpa [#allocation5], 0
    %s18 = scalar_lea.sflag [#allocation5], 1
    %19 = vsyncpa %s18, 0
    loop: start=0, step=1, limit=8
    $region2: #{tpu_custom_call.1} parent=1 // loop_pre_header
      _
    $region3: #{tpu_custom_call.1} parent=1 // loop_header
      %s21 = sphi 0, %s25
      %p22 = scmp.ge.s32.totalorder %s21, 8
      %s28 = sphi 0, %s40
      %s29 = sphi 0, %s36
      %s30 = sphi 0, %s28
      %s31 = sphi 0, %s29
      %s32 = sphi 0, %s30
      %s33 = sphi 0, %s31
      %s43 = sphi 0, %s45
      %s46 = sphi 0, %s43
      %s47 = sphi 0, %s46
      %s63 = sphi 0, %s47
      %s69 = sphi 0, %s71
      %s72 = sphi 0, %s69
      %s73 = sphi 0, %s72
      %s89 = sphi 0, %s73
      %s95 = sphi 0, %s97
      %s98 = sphi 0, %s95
      %s99 = sphi 0, %s98
      %s115 = sphi 0, %s99
      %s121 = sphi 0, %s123
      %s124 = sphi 0, %s121
      %s125 = sphi 0, %s124
      %s141 = sphi 0, %s125
      %s147 = sphi 0, %s149
      %s150 = sphi 0, %s147
      %s151 = sphi 0, %s150
      %s167 = sphi 0, %s151
      %s175 = sphi 0, %s177
      %s178 = sphi 0, %s175
      %s179 = sphi 0, %s178
      %s195 = sphi 0, %s179
    $region4: #{tpu_custom_call.1} parent=1 // loop_header_branch
      %24 = sbr.rel (%p22) target = $region8
    $region5: #{tpu_custom_call.1} parent=1 // loop_body
      %s26 = ssub.s32 %s21, 1
      %s27 = ssub.s32 %s21, 2
      %s34 = sadd.s32 1, %s29
      %p35 = scmp.ge.s32.totalorder %s34, 3
      %s36 = scalar_select %p35, 0, %s34
      %s37 = sadd.s32 1, %s28
      %s38 = scalar_select %p35, %s37, %s28
      %p39 = scmp.ge.s32.totalorder %s38, 2
      %s40 = scalar_select %p39, 0, %s38
      %s41 = ssub.s32 %s28, %s40
      %p42 = scmp.eq.s32.totalorder %s41, 0
      %s44 = sadd.s32 %s43, 1
      %s45 = scalar_select %p42, %s43, %s44
      %p48 = pneg %p42
      %p49 = scmp.eq.s32.totalorder %s21, 5
      %p50 = por %p48, %p49
      %p51 = scmp.ne.s32.totalorder %s43, %s46
      %p52 = scmp.eq.s32.totalorder %s21, 0
      %p53 = por %p51, %p52
      %p54 = scmp.ne.s32.totalorder %s43, %s46
      %p55 = scmp.eq.s32.totalorder %s26, 5
      %p56 = por %p54, %p55
      %p57 = scmp.ne.s32.totalorder %s46, %s47
      %p58 = scmp.eq.s32.totalorder %s26, 0
      %p59 = por %p57, %p58
      %p60 = scmp.ne.s32.totalorder %s46, %s47
      %p61 = scmp.eq.s32.totalorder %s27, 5
      %p62 = por %p60, %p61
      %p64 = scmp.ne.s32.totalorder %s47, %s63
      %p65 = scmp.eq.s32.totalorder %s27, 0
      %p66 = por %p64, %p65
      %s67 = ssub.s32 %s29, %s36
      %p68 = scmp.eq.s32.totalorder %s67, 0
      %s70 = sadd.s32 %s69, 1
      %s71 = scalar_select %p68, %s69, %s70
      %p74 = pneg %p68
      %p75 = scmp.eq.s32.totalorder %s21, 5
      %p76 = por %p74, %p75
      %p77 = scmp.ne.s32.totalorder %s69, %s72
      %p78 = scmp.eq.s32.totalorder %s21, 0
      %p79 = por %p77, %p78
      %p80 = scmp.ne.s32.totalorder %s69, %s72
      %p81 = scmp.eq.s32.totalorder %s26, 5
      %p82 = por %p80, %p81
      %p83 = scmp.ne.s32.totalorder %s72, %s73
      %p84 = scmp.eq.s32.totalorder %s26, 0
      %p85 = por %p83, %p84
      %p86 = scmp.ne.s32.totalorder %s72, %s73
      %p87 = scmp.eq.s32.totalorder %s27, 5
      %p88 = por %p86, %p87
      %p90 = scmp.ne.s32.totalorder %s73, %s89
      %p91 = scmp.eq.s32.totalorder %s27, 0
      %p92 = por %p90, %p91
      %s93 = ssub.s32 %s29, %s36
      %p94 = scmp.eq.s32.totalorder %s93, 0
      %s96 = sadd.s32 %s95, 1
      %s97 = scalar_select %p94, %s95, %s96
      %p100 = pneg %p94
      %p101 = scmp.eq.s32.totalorder %s21, 5
      %p102 = por %p100, %p101
      %p103 = scmp.ne.s32.totalorder %s95, %s98
      %p104 = scmp.eq.s32.totalorder %s21, 0
      %p105 = por %p103, %p104
      %p106 = scmp.ne.s32.totalorder %s95, %s98
      %p107 = scmp.eq.s32.totalorder %s26, 5
      %p108 = por %p106, %p107
      %p109 = scmp.ne.s32.totalorder %s98, %s99
      %p110 = scmp.eq.s32.totalorder %s26, 0
      %p111 = por %p109, %p110
      %p112 = scmp.ne.s32.totalorder %s98, %s99
      %p113 = scmp.eq.s32.totalorder %s27, 5
      %p114 = por %p112, %p113
      %p116 = scmp.ne.s32.totalorder %s99, %s115
      %p117 = scmp.eq.s32.totalorder %s27, 0
      %p118 = por %p116, %p117
      %s119 = ssub.s32 %s28, %s40
      %p120 = scmp.eq.s32.totalorder %s119, 0
      %s122 = sadd.s32 %s121, 1
      %s123 = scalar_select %p120, %s121, %s122
      %p126 = pneg %p120
      %p127 = scmp.eq.s32.totalorder %s21, 5
      %p128 = por %p126, %p127
      %p129 = scmp.ne.s32.totalorder %s121, %s124
      %p130 = scmp.eq.s32.totalorder %s21, 0
      %p131 = por %p129, %p130
      %p132 = scmp.ne.s32.totalorder %s121, %s124
      %p133 = scmp.eq.s32.totalorder %s26, 5
      %p134 = por %p132, %p133
      %p135 = scmp.ne.s32.totalorder %s124, %s125
      %p136 = scmp.eq.s32.totalorder %s26, 0
      %p137 = por %p135, %p136
      %p138 = scmp.ne.s32.totalorder %s124, %s125
      %p139 = scmp.eq.s32.totalorder %s27, 5
      %p140 = por %p138, %p139
      %p142 = scmp.ne.s32.totalorder %s125, %s141
      %p143 = scmp.eq.s32.totalorder %s27, 0
      %p144 = por %p142, %p143
      %s145 = ssub.s32 %s28, %s40
      %p146 = scmp.eq.s32.totalorder %s145, 0
      %s148 = sadd.s32 %s147, 1
      %s149 = scalar_select %p146, %s147, %s148
      %p152 = pneg %p146
      %p153 = scmp.eq.s32.totalorder %s21, 5
      %p154 = por %p152, %p153
      %p155 = scmp.ne.s32.totalorder %s147, %s150
      %p156 = scmp.eq.s32.totalorder %s21, 0
      %p157 = por %p155, %p156
      %p158 = scmp.ne.s32.totalorder %s147, %s150
      %p159 = scmp.eq.s32.totalorder %s26, 5
      %p160 = por %p158, %p159
      %p161 = scmp.ne.s32.totalorder %s150, %s151
      %p162 = scmp.eq.s32.totalorder %s26, 0
      %p163 = por %p161, %p162
      %p164 = scmp.ne.s32.totalorder %s150, %s151
      %p165 = scmp.eq.s32.totalorder %s27, 5
      %p166 = por %p164, %p165
      %p168 = scmp.ne.s32.totalorder %s151, %s167
      %p169 = scmp.eq.s32.totalorder %s27, 0
      %p170 = por %p168, %p169
      %s171 = ssub.s32 %s28, %s40
      %s172 = ssub.s32 %s29, %s36
      %s173 = sor.u32 %s171, %s172
      %p174 = scmp.eq.s32.totalorder %s173, 0
      %s176 = sadd.s32 %s175, 1
      %s177 = scalar_select %p174, %s175, %s176
      %p180 = pneg %p174
      %p181 = scmp.eq.s32.totalorder %s21, 5
      %p182 = por %p180, %p181
      %p183 = scmp.ne.s32.totalorder %s175, %s178
      %p184 = scmp.eq.s32.totalorder %s21, 0
      %p185 = por %p183, %p184
      %p186 = scmp.ne.s32.totalorder %s175, %s178
      %p187 = scmp.eq.s32.totalorder %s26, 5
      %p188 = por %p186, %p187
      %p189 = scmp.ne.s32.totalorder %s178, %s179
      %p190 = scmp.eq.s32.totalorder %s26, 0
      %p191 = por %p189, %p190
      %p192 = scmp.ne.s32.totalorder %s178, %s179
      %p193 = scmp.eq.s32.totalorder %s27, 5
      %p194 = por %p192, %p193
      %p196 = scmp.ne.s32.totalorder %s179, %s195
      %p197 = scmp.eq.s32.totalorder %s27, 0
      %p198 = por %p196, %p197
      %p199 = scmp.le.s32.totalorder 1, %s21
      %p200 = scmp.lt.s32.totalorder %s21, 7
      %p201 = pnand %p199, %p200
      %p202 = pneg %p201
      // Predicated region
      $region9: #{tpu_custom_call.1} parent=5 // pred_check
        _
      $region10: #{tpu_custom_call.1} parent=5 // pred_check_branch
        %204 = sbr.rel (%p201) target = $region12
      $region11: #{tpu_custom_call.1} parent=5 // pred_region
        %s205 = ssub.s32 %s21, 1
      $region12: #{tpu_custom_call.1} parent=5 // pred_fallthru
        _
      %p206 = scmp.lt.s32.totalorder %s21, 6
      // Predicated region
      $region13: #{tpu_custom_call.1} parent=5 // pred_check
        %p207 = pneg %p206
      $region14: #{tpu_custom_call.1} parent=5 // pred_check_branch
        %209 = sbr.rel (%p207) target = $region16
      $region15: #{tpu_custom_call.1} parent=5 // pred_region
        // Predicated region
        $region17: #{tpu_custom_call.1} parent=15 // pred_check
          %p210 = pneg %p53
        $region18: #{tpu_custom_call.1} parent=15 // pred_check_branch
          %212 = sbr.rel (%p210) target = $region20
        $region19: #{tpu_custom_call.1} parent=15 // pred_region
          %p213 = scmp.lt.s32.totalorder %s28, 1
          %s214 = scalar_select %p213, %s28, 1
          %s215 = smul.addr %s214, 8
          %s216 = scalar_lea.vmem %s1, %s215
        $region20: #{tpu_custom_call.1} parent=15 // pred_fallthru
          _
        // Predicated region
        $region21: #{tpu_custom_call.1} parent=15 // pred_check
          %p217 = pneg %p79
        $region22: #{tpu_custom_call.1} parent=15 // pred_check_branch
          %219 = sbr.rel (%p217) target = $region24
        $region23: #{tpu_custom_call.1} parent=15 // pred_region
          %s220 = smul.u32 16, %s29
          %p221 = scmp.lt.s32.totalorder %s220, 47
          %s222 = scalar_select %p221, %s220, 47
          %s223 = smul.addr %s222, 8
          %s224 = scalar_lea.vmem %s2, %s223
          %s225 = smul.u32 16, %s29
        $region24: #{tpu_custom_call.1} parent=15 // pred_fallthru
          _
        // Predicated region
        $region25: #{tpu_custom_call.1} parent=15 // pred_check
          %p226 = pneg %p105
        $region26: #{tpu_custom_call.1} parent=15 // pred_check_branch
          %228 = sbr.rel (%p226) target = $region28
        $region27: #{tpu_custom_call.1} parent=15 // pred_region
          %p229 = scmp.lt.s32.totalorder %s29, 2
          %s230 = scalar_select %p229, %s29, 2
          %s231 = scalar_lea.vmem %s3, %s230
        $region28: #{tpu_custom_call.1} parent=15 // pred_fallthru
          _
        // Predicated region
        $region29: #{tpu_custom_call.1} parent=15 // pred_check
          %p232 = pneg %p131
        $region30: #{tpu_custom_call.1} parent=15 // pred_check_branch
          %234 = sbr.rel (%p232) target = $region32
        $region31: #{tpu_custom_call.1} parent=15 // pred_region
          %p235 = scmp.lt.s32.totalorder %s28, 1
          %s236 = scalar_select %p235, %s28, 1
          %s237 = smul.addr %s236, 8
          %s238 = scalar_lea.vmem %s4, %s237
        $region32: #{tpu_custom_call.1} parent=15 // pred_fallthru
          _
        // Predicated region
        $region33: #{tpu_custom_call.1} parent=15 // pred_check
          %p239 = pneg %p157
        $region34: #{tpu_custom_call.1} parent=15 // pred_check_branch
          %241 = sbr.rel (%p239) target = $region36
        $region35: #{tpu_custom_call.1} parent=15 // pred_region
          %p242 = scmp.lt.s32.totalorder %s28, 1
          %s243 = scalar_select %p242, %s28, 1
          %s244 = smul.addr %s243, 8
          %s245 = scalar_lea.vmem %s5, %s244
        $region36: #{tpu_custom_call.1} parent=15 // pred_fallthru
          _
      $region16: #{tpu_custom_call.1} parent=5 // pred_fallthru
        _
      %p246 = scmp.le.s32.totalorder 1, %s21
      %p247 = scmp.lt.s32.totalorder %s21, 7
      %p248 = pnand %p246, %p247
      %p249 = pneg %p248
      // Predicated region
      $region37: #{tpu_custom_call.1} parent=5 // pred_check
        _
      $region38: #{tpu_custom_call.1} parent=5 // pred_check_branch
        %251 = sbr.rel (%p248) target = $region40
      $region39: #{tpu_custom_call.1} parent=5 // pred_region
        %s252 = ssub.s32 %s21, 1
        %p253 = scmp.lt.s32.totalorder %s30, 1
        %s254 = scalar_select %p253, %s30, 1
        %s255 = smul.addr %s254, 8
        %s256 = scalar_lea.vmem %s1, %s255
        %p257 = pneg %p59
        %p258 = pneg %p56
        %s259 = smul.u32 16, %s31
        %p260 = scmp.lt.s32.totalorder %s259, 47
        %s261 = scalar_select %p260, %s259, 47
        %s262 = smul.addr %s261, 8
        %s263 = scalar_lea.vmem %s2, %s262
        %p264 = pneg %p85
        %p265 = pneg %p82
        %p266 = scmp.lt.s32.totalorder %s31, 2
        %s267 = scalar_select %p266, %s31, 2
        %s268 = scalar_lea.vmem %s3, %s267
        %p269 = pneg %p111
        %p270 = pneg %p108
        %p271 = scmp.lt.s32.totalorder %s30, 1
        %s272 = scalar_select %p271, %s30, 1
        %s273 = smul.addr %s272, 8
        %s274 = scalar_lea.vmem %s4, %s273
        %p275 = pneg %p137
        %p276 = pneg %p134
        %p277 = scmp.lt.s32.totalorder %s30, 1
        %s278 = scalar_select %p277, %s30, 1
        %s279 = smul.addr %s278, 8
        %s280 = scalar_lea.vmem %s5, %s279
        %p281 = pneg %p163
        %p282 = pneg %p160
        %p283 = pneg %p191
        %p284 = pneg %p188
        %s285 = sand.u32 %s178, 1
        %s286 = scalar_lea.sflag [#allocation5], %s285
        %s287 = sand.u32 %s178, 1
        %s288 = smul.addr %s287, 8
        %s289 = scalar_lea.vmem [#allocation4], %s288
        %p290 = scmp.lt.s32.totalorder %s30, 1
        %s291 = scalar_select %p290, %s30, 1
        %s292 = smul.addr %s291, 8
        %s293 = scalar_lea.vmem %s1, %s292
        %s294 = smul.u32 16, %s31
        %p295 = scmp.lt.s32.totalorder %s294, 47
        %s296 = scalar_select %p295, %s294, 47
        %s297 = smul.addr %s296, 8
        %s298 = scalar_lea.vmem %s2, %s297
        %s299 = smul.u32 16, %s31
        %p300 = scmp.lt.s32.totalorder %s31, 2
        %s301 = scalar_select %p300, %s31, 2
        %s302 = scalar_lea.vmem %s3, %s301
        %p303 = scmp.lt.s32.totalorder %s30, 1
        %s304 = scalar_select %p303, %s30, 1
        %s305 = smul.addr %s304, 8
        %s306 = scalar_lea.vmem %s4, %s305
        %p307 = scmp.lt.s32.totalorder %s30, 1
        %s308 = scalar_select %p307, %s30, 1
        %s309 = smul.addr %s308, 8
        %s310 = scalar_lea.vmem %s5, %s309
        %v311 = vld [vmem:[%s293] sm:$0xff]
        %v312 = vld [vmem:[%s298] sm:$0xff]
        %v313 = vld [vmem:[%s298 + $0x8] sm:$0xff]
        %v314 = vld [vmem:[%s298 + $0x10] sm:$0xff]
        %v315 = vld [vmem:[%s298 + $0x18] sm:$0xff]
        %v316 = vld [vmem:[%s298 + $0x20] sm:$0xff]
        %v317 = vld [vmem:[%s298 + $0x28] sm:$0xff]
        %v318 = vld [vmem:[%s298 + $0x30] sm:$0xff]
        %v319 = vld [vmem:[%s298 + $0x38] sm:$0xff]
        %v320 = vld [vmem:[%s298 + $0x40] sm:$0xff]
        %v321 = vld [vmem:[%s298 + $0x48] sm:$0xff]
        %v322 = vld [vmem:[%s298 + $0x50] sm:$0xff]
        %v323 = vld [vmem:[%s298 + $0x58] sm:$0xff]
        %v324 = vld [vmem:[%s298 + $0x60] sm:$0xff]
        %v325 = vld [vmem:[%s298 + $0x68] sm:$0xff]
        %v326 = vld [vmem:[%s298 + $0x70] sm:$0xff]
        %v327 = vld [vmem:[%s298 + $0x78] sm:$0xff]
        %vm328 = vcmask 523264
        %v330 = vsel %vm328, %v311, 0
        %v333 = vsel %vm328, %v312, 0
        %v336 = vsel %vm328, %v313, 0
        %v339 = vsel %vm328, %v314, 0
        %v342 = vsel %vm328, %v315, 0
        %v345 = vsel %vm328, %v316, 0
        %v348 = vsel %vm328, %v317, 0
        %v351 = vsel %vm328, %v318, 0
        %v354 = vsel %vm328, %v319, 0
        %v357 = vsel %vm328, %v320, 0
        %v360 = vsel %vm328, %v321, 0
        %v363 = vsel %vm328, %v322, 0
        %v366 = vsel %vm328, %v323, 0
        %v369 = vsel %vm328, %v324, 0
        %v372 = vsel %vm328, %v325, 0
        %v375 = vsel %vm328, %v326, 0
        %v378 = vsel %vm328, %v327, 0
        %380 = vmatprep.subr.mxu0 0.0
        %381 = vmatpush1.xpose.msra.mxu0 %v333
        %382 = vmatprep.subr.mxu0 0.0
        %383 = vmatpush1.xpose.msra.mxu0 %v336
        %384 = vmatprep.subr.mxu0 0.0
        %385 = vmatpush1.xpose.msra.mxu0 %v339
        %386 = vmatprep.subr.mxu0 0.0
        %387 = vmatpush1.xpose.msra.mxu0 %v342
        %388 = vmatprep.subr.mxu0 0.0
        %389 = vmatpush1.xpose.msra.mxu0 %v345
        %390 = vmatprep.subr.mxu0 0.0
        %391 = vmatpush1.xpose.msra.mxu0 %v348
        %392 = vmatprep.subr.mxu0 0.0
        %393 = vmatpush1.xpose.msra.mxu0 %v351
        %394 = vmatprep.subr.mxu0 0.0
        %395 = vmatpush1.xpose.msra.mxu0 %v354
        %396 = vmatprep.subr.mxu0 0.0
        %397 = vmatpush1.xpose.msra.mxu0 %v357
        %398 = vmatprep.subr.mxu0 0.0
        %399 = vmatpush1.xpose.msra.mxu0 %v360
        %400 = vmatprep.subr.mxu0 0.0
        %401 = vmatpush1.xpose.msra.mxu0 %v363
        %402 = vmatprep.subr.mxu0 0.0
        %403 = vmatpush1.xpose.msra.mxu0 %v366
        %404 = vmatprep.subr.mxu0 0.0
        %405 = vmatpush1.xpose.msra.mxu0 %v369
        %406 = vmatprep.subr.mxu0 0.0
        %407 = vmatpush1.xpose.msra.mxu0 %v372
        %408 = vmatprep.subr.mxu0 0.0
        %409 = vmatpush1.xpose.msra.mxu0 %v375
        %410 = vmatprep.subr.mxu0 0.0
        %411 = vmatpush1.xpose.msra.mxu0 %v378
        %412 = vmatprep.subr.mxu0 0.0
        %413 = vmatpush1.xpose.msra.mxu0 0.0
        %414 = vmatprep.subr.mxu0 0.0
        %415 = vmatpush1.xpose.msra.mxu0 0.0
        %416 = vmatprep.subr.mxu0 0.0
        %417 = vmatpush1.xpose.msra.mxu0 0.0
        %418 = vmatprep.subr.mxu0 0.0
        %419 = vmatpush1.xpose.msra.mxu0 0.0
        %420 = vmatprep.subr.mxu0 0.0
        %421 = vmatpush1.xpose.msra.mxu0 0.0
        %422 = vmatprep.subr.mxu0 0.0
        %423 = vmatpush1.xpose.msra.mxu0 0.0
        %424 = vmatprep.subr.mxu0 0.0
        %425 = vmatpush1.xpose.msra.mxu0 0.0
        %426 = vmatprep.subr.mxu0 0.0
        %427 = vmatpush1.xpose.msra.mxu0 0.0
        %428 = vmatprep.subr.mxu0 0.0
        %429 = vmatpush1.xpose.msra.mxu0 0.0
        %430 = vmatprep.subr.mxu0 0.0
        %431 = vmatpush1.xpose.msra.mxu0 0.0
        %432 = vmatprep.subr.mxu0 0.0
        %433 = vmatpush1.xpose.msra.mxu0 0.0
        %434 = vmatprep.subr.mxu0 0.0
        %435 = vmatpush1.xpose.msra.mxu0 0.0
        %436 = vmatprep.subr.mxu0 0.0
        %437 = vmatpush1.xpose.msra.mxu0 0.0
        %438 = vmatprep.subr.mxu0 0.0
        %439 = vmatpush1.xpose.msra.mxu0 0.0
        %440 = vmatprep.subr.mxu0 0.0
        %441 = vmatpush1.xpose.msra.mxu0 0.0
        %442 = vmatprep.subr.mxu0 0.0
        %443 = vmatpush1.xpose.msra.mxu0 0.0
        %444 = vmatprep.mubr.f32.mxu0 0.0
        %445 = vmatmul.mubr.f32.gmra.mrb[0].mxu0 %v330
        %v446 = vpop.f32.mrb[0].mxu0
        %v447 = vadd.f32 0.0, %v446
        %v448 = vpop.f32.mrb[0].mxu0
        %449 = vdwg.mxu0
        %v450 = vld [vmem:[%s302] sm:$0x1]
        %v452 = vlaneseq
        %v453 = vshrl.u32 %v452, 7
        %v454 = vsub.s32 0, %v453
        %v455 = vrot.slane %v450, %v454
        %v457 = vmul.f32 %v447, %v455
        %v458 = vld [vmem:[%s306] sm:$0xff]
        %460 = vset.pattern.permute.xlu0 0
        %461 = vperm.xlu0 %460, %v458
        %v462 = vpop.permute.xlu0 %461
        %v464 = vmul.f32 %v457, %v462
        %s465 = sshra.s32 %s31, 7
        %s466 = sand.u32 %s31, 127
        %s467 = sadd.s32 %s465, %s30
        %s468 = smul.u32 %s467, 128
        %s469 = sshra.s32 %s31, 7
        %s470 = sand.u32 %s31, 127
        %s471 = sadd.s32 %s468, %s470
        %s472 = sld [smem:[#allocation3 + %s471]]
        %p473 = scmp.gt.s32.totalorder %s472, 0
        // Predicated region
        $region41: #{tpu_custom_call.1} parent=39 // pred_check
          %p474 = pneg %p473
        $region42: #{tpu_custom_call.1} parent=39 // pred_check_branch
          %476 = sbr.rel (%p474) target = $region44
        $region43: #{tpu_custom_call.1} parent=39 // pred_region
          %v477 = vld [vmem:[%s310] sm:$0xff]
          %v478 = vlaneseq
          %v479 = vand.u32 %v478, 127
          %s480 = smul.u32 %s31, 128
          %v481 = vstv %s480
          %v482 = vadd.s32 %v479, %v481
          %483 = vset.pattern.permute.xlu0 0
          %484 = vperm.xlu0 %483, %v477
          %v485 = vpop.permute.xlu0 %484
          %vm486 = vcmp.eq.s32.totalorder %v482, %v485
          %v487 = vsel %vm486, %v457, 0.0
          %488 = vadd.xlane.f32.xlu0 %v487
          %v489 = vpop.xlane.xlu0 %488
          %v490 = vmul.f32 %v489, %v458
          %v491 = vmul.f32 %v490, 0.033333335
          %v492 = vmul.f32 %v491, %v491
          %v493 = vsub.f32 1.0, %v492
          %v494 = vmax.f32 %v493, 0.0
          %v495 = vrsqrt.pop %v494
          %v496 = vmul.f32 %v494, %v495
          %vm497 = vcmp.eq.f32.partialorder %v494, inf
          %v498 = vsel %vm497, %v494, %v496
          %vm499 = vcmp.eq.f32.partialorder %v494, 0.0
          %v500 = vand.u32 %v494, 2147483648
          %v501 = vsel %vm499, %v500, %v498
          %v502 = vmul.f32 %v491, 0.9950042
          %v503 = vmul.f32 %v501, 0.099833414
          %v504 = vsub.f32 %v502, %v503
          %vm505 = vcmp.gt.f32.partialorder %v491, 0.0
          %v506 = vsel %vm505, %v504, %v491
          %v507 = vmul.f32 %v506, 30.0
          %509 = vset.pattern.permute.xlu0 0
          %510 = vperm.xlu0 %509, %v507
          %v511 = vpop.permute.xlu0 %510
          %v513 = vsel %vm486, %v511, %v464
          %514 = vst [vmem:[%s289] sm:$0xff] %v513
        $region44: #{tpu_custom_call.1} parent=39 // pred_fallthru
          _
        %p515 = scmp.le.s32.totalorder %s472, 0
        // Predicated region
        $region45: #{tpu_custom_call.1} parent=39 // pred_check
          %p516 = pneg %p515
        $region46: #{tpu_custom_call.1} parent=39 // pred_check_branch
          %518 = sbr.rel (%p516) target = $region48
        $region47: #{tpu_custom_call.1} parent=39 // pred_region
          %519 = vst [vmem:[%s289] sm:$0xff] %v464
        $region48: #{tpu_custom_call.1} parent=39 // pred_fallthru
          _
        %s520 = sand.u32 %s178, 1
        %s521 = scalar_lea.sflag [#allocation5], %s520
        %s522 = sand.u32 %s178, 1
        %s523 = smul.addr %s522, 8
        %s524 = scalar_lea.vmem [#allocation4], %s523
        // Predicated region
        $region49: #{tpu_custom_call.1} parent=39 // pred_check
          %p525 = pneg %p188
        $region50: #{tpu_custom_call.1} parent=39 // pred_check_branch
          %527 = sbr.rel (%p525) target = $region52
        $region51: #{tpu_custom_call.1} parent=39 // pred_region
          %s529 = ssub.s32 128, 128
          %530 = vsyncadd %s521, %s529
          %s531 = smul.addr %s30, 3
          %s532 = sadd.s32 %s31, %s531
          %s533 = smul.addr %s532, 128
          %s534 = scalar_lea.hbm %s6, %s533
          %s536 = sshll.u32 %s524, 4
          %s537 = int_to_ptr.vmem [resolvable:$true] %s536
          %539 = dma.vmem_to_hbm [thread:$0]  %s537, 128, %s534, %s521
        $region52: #{tpu_custom_call.1} parent=39 // pred_fallthru
          _
      $region40: #{tpu_custom_call.1} parent=5 // pred_fallthru
        _
      %p540 = scmp.le.s32.totalorder 2, %s21
      // Predicated region
      $region53: #{tpu_custom_call.1} parent=5 // pred_check
        %p541 = pneg %p540
      $region54: #{tpu_custom_call.1} parent=5 // pred_check_branch
        %543 = sbr.rel (%p541) target = $region56
      $region55: #{tpu_custom_call.1} parent=5 // pred_region
        %s544 = ssub.s32 %s21, 2
        // Predicated region
        $region57: #{tpu_custom_call.1} parent=55 // pred_check
          %p545 = pneg %p194
        $region58: #{tpu_custom_call.1} parent=55 // pred_check_branch
          %547 = sbr.rel (%p545) target = $region60
        $region59: #{tpu_custom_call.1} parent=55 // pred_region
          %s548 = sand.u32 %s179, 1
          %s549 = scalar_lea.sflag [#allocation5], %s548
          %s550 = sand.u32 %s179, 1
          %s551 = smul.addr %s550, 8
          %s552 = scalar_lea.vmem [#allocation4], %s551
          %553 = dma.done %s549, 128
        $region60: #{tpu_custom_call.1} parent=55 // pred_fallthru
          _
      $region56: #{tpu_custom_call.1} parent=5 // pred_fallthru
        _
    $region6: #{tpu_custom_call.1} parent=1 // loop_footer
      %s25 = sadd.s32 1, %s21
    $region7: #{tpu_custom_call.1} parent=1 // loop_footer_branch
      %20 = sbr.rel target = $region3
    $region8: #{tpu_custom_call.1} parent=1 // loop_exit
      _
    %554 = vsyncpa [#allocation5], 1
    %s555 = scalar_lea.sflag [#allocation5], 1
    %556 = vsyncpa %s555, 1

</llo_original>
